<compile_context>
chip_gen: v7x
topology: tpu7x:2x2x1
jax: 0.10.0
libtpu: 0.0.40
codegen_flags: <defaults>
</compile_context>

<pallas_src>
import functools

import jax
import jax.numpy as jnp
import numpy as np
from jax.experimental import pallas as pl
from jax.experimental.pallas import tpu as pltpu

EPS = 1e-8


def _round_up(x, m):
    return ((x + m - 1) // m) * m


def _vmem_capacity_bytes():
    """Physical VMEM of the local chip; conservative default if unqueryable."""
    try:
        cap = getattr(pltpu.get_tpu_info(), "vmem_capacity_bytes", None)
        if cap:
            return int(cap)
    except Exception:
        pass
    return 64 * 1024 * 1024  # v7x-sized lower bound; safe on v5e/v6e too.


def _choose_tk(img_dim, latent_pad, w_itemsize, budget):
    """Reduction (K) tile: keep the whole weight resident unless it would eat
    more than ~40% of the VMEM budget; then stream K-tiles of the weight."""
    full = img_dim * latent_pad * w_itemsize
    if full <= (2 * budget) // 5 or img_dim % 128 != 0:
        # TODO(synk): if img_dim is not a multiple of 128, a huge weight cannot
        # be K-tiled without ragged-K reads; we keep it resident and let the
        # row tile shrink instead.
        return img_dim
    divisors = [c for c in range(128, img_dim, 128) if img_dim % c == 0]
    for c in sorted(divisors, reverse=True):
        if 2 * c * latent_pad * w_itemsize <= (2 * budget) // 5:
            return c
    return divisors[0] if divisors else img_dim


def _scan_precomp_kernel(x_ref, w_ref, b_ref, o_ref, acc_ref, *,
                         no_imgnorm, approx_recip, compute_dtype):
    # x_ref: (tm, tk)  w_ref: (tk, latent_pad)  b_ref: (1, latent_pad)
    # o_ref: (tm, latent_pad)  acc_ref: (tm, latent_pad) f32 scratch
    k = pl.program_id(1)

    @pl.when(k == 0)
    def _():
        acc_ref[...] = jnp.zeros_like(acc_ref)

    # In-kernel operand cast: hidden under the MXU, and the big activation
    # tensor never takes an extra HBM round trip in the wrapper.
    x = x_ref[...]
    if x.dtype != compute_dtype:
        x = x.astype(compute_dtype)
    w = w_ref[...]
    if w.dtype != compute_dtype:
        w = w.astype(compute_dtype)
    acc_ref[...] += jnp.dot(x, w, preferred_element_type=jnp.float32)

    @pl.when(k == pl.num_programs(1) - 1)
    def _():
        feat = acc_ref[...] + b_ref[...].astype(jnp.float32)
        if not no_imgnorm:
            # Padded latent columns are zero, so they do not perturb the norm.
            norm = jnp.sqrt(jnp.sum(feat * feat, axis=-1, keepdims=True)) + EPS
            if approx_recip:
                feat = feat * pl.reciprocal(norm, approx=True)  # EUP slot
            else:
                feat = feat / norm
        o_ref[...] = feat.astype(o_ref.dtype)


def _xla_forward(images, weight, bias, no_imgnorm, out_dtype):
    """Small-M fallback: plain XLA is faster than a 1-step Pallas grid."""
    feat = jnp.dot(images, weight, preferred_element_type=jnp.float32)
    feat = feat + bias.astype(jnp.float32)
    if not no_imgnorm:
        norm = jnp.sqrt(jnp.sum(feat * feat, axis=-1, keepdims=True)) + EPS
        feat = feat / norm
    return feat.astype(out_dtype)


def scan_image_precomp(images, weight, bias, *, no_imgnorm=False,
                       operand_dtype=jnp.bfloat16, approx_recip=True,
                       tm=None, tk=None, single_buffer_params=True,
                       xla_fallback_rows=1024):
    """images: (..., img_dim). weight: (img_dim, latent). bias: (latent,)."""
    orig_shape = images.shape
    img_dim = orig_shape[-1]
    latent = weight.shape[1]
    out_dtype = images.dtype

    x2d = images.reshape(-1, img_dim)
    M = x2d.shape[0]

    # Tiny batches: launch + pipeline warmup dominates a 1-step grid.
    if M < xla_fallback_rows:
        return _xla_forward(images, weight, bias, no_imgnorm, out_dtype)

    # bf16 MXU operands by default; only the (small) parameter is cast in the
    # wrapper (one-time, tiny vs. the activation tensor).
    if operand_dtype is not None:
        compute_dtype = jnp.dtype(operand_dtype)
        if weight.dtype != compute_dtype:
            weight = weight.astype(compute_dtype)
    else:
        compute_dtype = jnp.dtype(x2d.dtype)

    # Lane-dense output: pad latent to a multiple of 128 (unmasked `vst`).
    # Skipped entirely when latent is already 128-aligned (typical SCAN 1024).
    latent_pad = _round_up(latent, 128)
    if latent_pad != latent:
        weight = jnp.pad(weight, ((0, 0), (0, latent_pad - latent)))
        bias = jnp.pad(bias, (0, latent_pad - latent))
    bias2d = bias.astype(jnp.float32).reshape(1, latent_pad)

    x_bytes = jnp.dtype(x2d.dtype).itemsize
    w_bytes = jnp.dtype(weight.dtype).itemsize
    o_bytes = jnp.dtype(out_dtype).itemsize

    cap = _vmem_capacity_bytes()
    budget = int(cap * 0.70)        # ~0.70 x physical VMEM (generation-aware)

    if tk is None:
        tk = _choose_tk(img_dim, latent_pad, w_bytes, budget)
    tk = int(tk)
    if img_dim % tk != 0 or (tk % 128 != 0 and tk != img_dim):
        raise ValueError(f"tk={tk} must divide img_dim={img_dim} and be a "
                         "multiple of 128 (or equal img_dim)")
    k_steps = img_dim // tk

    # Resident weight (constant index_map) only needs one buffer; a streamed
    # K-tiled weight keeps the default double buffer.
    w_bufs = 1 if (single_buffer_params and k_steps == 1) else 2

    def vmem_bytes(t):
        return (w_bufs * tk * latent_pad * w_bytes      # weight buffer(s)
                + 2 * latent_pad * 4                    # bias
                + 2 * t * tk * x_bytes                  # x double buffer
                + 2 * t * latent_pad * o_bytes          # out double buffer
                + t * latent_pad * 4)                   # f32 accumulator

    if tm is None:
        tm = 512
        while tm > 8 and vmem_bytes(tm) > budget:
            tm //= 2
    tm = max(8, min(int(tm), _round_up(M, 8)))
    tm = _round_up(tm, 8)

    # v7x has 2 TensorCores on the "parallel" row axis: for tiny odd row
    # grids, split the tile so both cores get balanced work.
    if pl.cdiv(M, tm) % 2 == 1 and pl.cdiv(M, tm) < 8 and tm >= 512:
        tm = _round_up(tm // 2, 8)
    m_steps = pl.cdiv(M, tm)

    # Leave room for the double-buffered fallback if pl.Buffered(1) is
    # unsupported by this jax version.
    headroom = (2 - w_bufs) * tk * latent_pad * w_bytes
    vmem_limit = int(min(max(vmem_bytes(tm) + headroom + (4 << 20), 32 << 20),
                         int(cap * 0.85)))

    kernel = functools.partial(
        _scan_precomp_kernel, no_imgnorm=no_imgnorm,
        approx_recip=approx_recip, compute_dtype=compute_dtype)

    def _spec(shape, index_map, mode=None):
        if mode is None:
            return pl.BlockSpec(shape, index_map)
        return pl.BlockSpec(shape, index_map, pipeline_mode=mode)

    def run(param_buffer_count):
        mode = (pl.Buffered(param_buffer_count)
                if param_buffer_count is not None else None)
        grid_spec = pltpu.PrefetchScalarGridSpec(
            num_scalar_prefetch=0,
            grid=(m_steps, k_steps),
            in_specs=[
                pl.BlockSpec((tm, tk), lambda i, k: (i, k)),
                _spec((tk, latent_pad), lambda i, k: (k, 0),
                      mode if k_steps == 1 else None),
                _spec((1, latent_pad), lambda i, k: (0, 0), mode),
            ],
            out_specs=pl.BlockSpec((tm, latent_pad), lambda i, k: (i, 0)),
            scratch_shapes=[pltpu.VMEM((tm, latent_pad), jnp.float32)],
        )
        return pl.pallas_call(
            kernel,
            out_shape=jax.ShapeDtypeStruct((M, latent_pad), out_dtype),
            grid_spec=grid_spec,
            compiler_params=pltpu.CompilerParams(
                dimension_semantics=("parallel", "arbitrary"),
                vmem_limit_bytes=vmem_limit,
            ),
        )(x2d, weight, bias2d)

    if single_buffer_params:
        # Single-buffer the grid-invariant params (halves their VMEM
        # footprint). Correctness is unaffected either way (constant blocks),
        # so fall back to default buffering if this jax rejects Buffered(1).
        try:
            out = run(1)
        except Exception:
            out = run(None)
    else:
        out = run(None)

    if latent_pad != latent:
        out = out[:, :latent]
    return out.reshape(*orig_shape[:-1], latent)


def init_params(img_dim, latent_size, key):
    """Xavier-uniform weight (as in init_weights), zero bias, deterministic."""
    r = np.sqrt(6.0) / np.sqrt(img_dim + latent_size)
    # PyTorch Linear stores weight as (out, in); we keep (in, out) for x @ W.
    w = jax.random.uniform(key, (img_dim, latent_size), jnp.float32, -r, r)
    b = jnp.zeros((latent_size,), jnp.float32)
    return w, b


def reference(images, weight, bias, no_imgnorm=False):
    feat = jnp.einsum("...d,dk->...k", images, weight) + bias
    if not no_imgnorm:
        norm = jnp.sqrt(jnp.sum(feat * feat, axis=-1, keepdims=True)) + EPS
        feat = feat / norm
    return feat


if __name__ == "__main__":
    key = jax.random.PRNGKey(0)
    k_img, k_w, k_b, k_img2, k_w2, k_b2 = jax.random.split(key, 6)

    B, R, IMG_DIM, LATENT = 2, 8, 64, 32
    images = jax.random.normal(k_img, (B, R, IMG_DIM), jnp.float32)
    weight, _ = init_params(IMG_DIM, LATENT, k_w)
    bias = 0.05 * jax.random.normal(k_b, (LATENT,), jnp.float32)
    ref = reference(images, weight, bias, no_imgnorm=False)

    # 1) Default call: M = B*R = 16 rows -> small-M XLA fallback path.
    out = jax.block_until_ready(scan_image_precomp(images, weight, bias))
    np.testing.assert_allclose(np.asarray(out), np.asarray(ref),
                               rtol=1e-5, atol=1e-5)

    # 2) Pallas path, strict f32 operands + exact reciprocal.
    out = jax.block_until_ready(scan_image_precomp(
        images, weight, bias, operand_dtype=None, approx_recip=False,
        xla_fallback_rows=0))
    np.testing.assert_allclose(np.asarray(out), np.asarray(ref),
                               rtol=2e-3, atol=2e-3)

    # 3) Pallas path, default bf16 MXU operands + approx reciprocal.
    out = jax.block_until_ready(scan_image_precomp(
        images, weight, bias, xla_fallback_rows=0))
    np.testing.assert_allclose(np.asarray(out), np.asarray(ref),
                               rtol=3e-2, atol=3e-2)

    # 4) Pallas path exercising the tiled-K reduction (img_dim=256, tk=128).
    IMG_DIM2 = 256
    images2 = jax.random.normal(k_img2, (B, R, IMG_DIM2), jnp.float32)
    weight2, _ = init_params(IMG_DIM2, LATENT, k_w2)
    bias2 = 0.05 * jax.random.normal(k_b2, (LATENT,), jnp.float32)
    ref2 = reference(images2, weight2, bias2, no_imgnorm=True)
    out2 = jax.block_until_ready(scan_image_precomp(
        images2, weight2, bias2, no_imgnorm=True, operand_dtype=None,
        approx_recip=False, tk=128, xla_fallback_rows=0))
    np.testing.assert_allclose(np.asarray(out2), np.asarray(ref2),
                               rtol=2e-2, atol=2e-2)

    print("KERNEL_OK")
</pallas_src>

<mosaic_0001>
module attributes {stable_mosaic.version = 11 : i64} {
  func.func @_scan_precomp_kernel(%arg0: i32, %arg1: i32, %arg2: memref<16x64xf32, #tpu.memory_space<vmem>>, %arg3: memref<64x128xf32, #tpu.memory_space<vmem>>, %arg4: memref<1x128xf32, #tpu.memory_space<vmem>>, %arg5: memref<16x128xf32, #tpu.memory_space<vmem>>, %arg6: memref<16x128xf32, #tpu.memory_space<vmem>>) attributes {dimension_semantics = [#tpu.dimension_semantics<parallel>, #tpu.dimension_semantics<arbitrary>], iteration_bounds = array<i64: 1, 1>, scalar_prefetch = 0 : i64, scratch_operands = 1 : i64, tpu.core_type = #tpu.core_type<tc>, window_params = [{transform_indices = @transform_0, window_bounds = array<i64: 16, 64>}, {pipeline_mode = #tpu.pipeline_mode<synchronous>, transform_indices = @transform_1, window_bounds = array<i64: 64, 128>}, {pipeline_mode = #tpu.pipeline_mode<synchronous>, transform_indices = @transform_2, window_bounds = array<i64: 1, 128>}, {transform_indices = @transform_3, window_bounds = array<i64: 16, 128>}]} {
    %c0_i32 = arith.constant 0 : i32
    %0 = arith.cmpi eq, %arg1, %c0_i32 : i32
    %1 = arith.extui %0 : i1 to i32
    %c0_i32_0 = arith.constant 0 : i32
    %2 = arith.cmpi ne, %1, %c0_i32_0 : i32
    scf.if %2 {
      %cst_10 = arith.constant 0.000000e+00 : f32
      %12 = vector.broadcast %cst_10 : f32 to vector<16x128xf32>
      %c0_11 = arith.constant 0 : index
      %c0_12 = arith.constant 0 : index
      %13 = vector.load %arg6[%c0_11, %c0_12] : memref<16x128xf32, #tpu.memory_space<vmem>>, vector<16x128xf32>
      tpu.vector_store %arg6[%c0_11, %c0_12], %12 {strides = array<i32>} : memref<16x128xf32, #tpu.memory_space<vmem>>, vector<16x128xf32>,
    } else {
    }
    %c0 = arith.constant 0 : index
    %c0_1 = arith.constant 0 : index
    %3 = vector.load %arg2[%c0, %c0_1] : memref<16x64xf32, #tpu.memory_space<vmem>>, vector<16x64xf32>
    %c0_2 = arith.constant 0 : index
    %c0_3 = arith.constant 0 : index
    %4 = vector.load %arg3[%c0_2, %c0_3] : memref<64x128xf32, #tpu.memory_space<vmem>>, vector<64x128xf32>
    %c0_4 = arith.constant 0 : index
    %c0_5 = arith.constant 0 : index
    %5 = vector.load %arg6[%c0_4, %c0_5] : memref<16x128xf32, #tpu.memory_space<vmem>>, vector<16x128xf32>
    %cst = arith.constant dense<0.000000e+00> : vector<16x128xf32>
    %6 = tpu.matmul %3, %4, %cst {dimension_numbers = #tpu.dot_dimension_numbers<[1], [0], [0], [1], [0, 0, 1, 1], [], []>} : vector<16x64xf32>, vector<64x128xf32>, vector<16x128xf32> -> vector<16x128xf32>
    %7 = arith.addf %5, %6 : vector<16x128xf32>
    %c0_6 = arith.constant 0 : index
    %c0_7 = arith.constant 0 : index
    %8 = vector.load %arg6[%c0_6, %c0_7] : memref<16x128xf32, #tpu.memory_space<vmem>>, vector<16x128xf32>
    tpu.vector_store %arg6[%c0_6, %c0_7], %7 {strides = array<i32>} : memref<16x128xf32, #tpu.memory_space<vmem>>, vector<16x128xf32>,
    %c0_i32_8 = arith.constant 0 : i32
    %9 = arith.cmpi eq, %arg1, %c0_i32_8 : i32
    %10 = arith.extui %9 : i1 to i32
    %c0_i32_9 = arith.constant 0 : i32
    %11 = arith.cmpi ne, %10, %c0_i32_9 : i32
    scf.if %11 {
      %c0_10 = arith.constant 0 : index
      %c0_11 = arith.constant 0 : index
      %12 = vector.load %arg6[%c0_10, %c0_11] : memref<16x128xf32, #tpu.memory_space<vmem>>, vector<16x128xf32>
      %c0_12 = arith.constant 0 : index
      %c0_13 = arith.constant 0 : index
      %13 = vector.load %arg4[%c0_12, %c0_13] : memref<1x128xf32, #tpu.memory_space<vmem>>, vector<1x128xf32>
      %14 = vector.broadcast %13 : vector<1x128xf32> to vector<16x128xf32>
      %15 = arith.addf %12, %14 : vector<16x128xf32>
      %16 = arith.mulf %15, %15 : vector<16x128xf32>
      %cst_14 = arith.constant dense<0.000000e+00> : vector<16xf32>
      %17 = vector.multi_reduction <add>, %16, %cst_14 [1] : vector<16x128xf32> to vector<16xf32>
      %18 = vector.shape_cast %17 : vector<16xf32> to vector<16x1xf32>
      %19 = math.sqrt %18 : vector<16x1xf32>
      %cst_15 = arith.constant 9.99999993E-9 : f32
      %20 = vector.broadcast %cst_15 : f32 to vector<16x1xf32>
      %21 = arith.addf %19, %20 : vector<16x1xf32>
      %22 = vector.broadcast %21 : vector<16x1xf32> to vector<16x128xf32>
      %23 = arith.divf %15, %22 : vector<16x128xf32>
      %c0_16 = arith.constant 0 : index
      %c0_17 = arith.constant 0 : index
      %24 = vector.load %arg5[%c0_16, %c0_17] : memref<16x128xf32, #tpu.memory_space<vmem>>, vector<16x128xf32>
      tpu.vector_store %arg5[%c0_16, %c0_17], %23 {strides = array<i32>} : memref<16x128xf32, #tpu.memory_space<vmem>>, vector<16x128xf32>,
    } else {
    }
    return
  }
  func.func @transform_0(%arg0: i32, %arg1: i32) -> (i32, i32) {
    %c0_i32 = arith.constant 0 : i32
    return %arg0, %arg1 : i32, i32
  }
  func.func @transform_1(%arg0: i32, %arg1: i32) -> (i32, i32) {
    %c0_i32 = arith.constant 0 : i32
    %c0_i32_0 = arith.constant 0 : i32
    return %arg1, %c0_i32 : i32, i32
  }
  func.func @transform_2(%arg0: i32, %arg1: i32) -> (i32, i32) {
    %c0_i32 = arith.constant 0 : i32
    %c0_i32_0 = arith.constant 0 : i32
    %c0_i32_1 = arith.constant 0 : i32
    return %c0_i32, %c0_i32_0 : i32, i32
  }
  func.func @transform_3(%arg0: i32, %arg1: i32) -> (i32, i32) {
    %c0_i32 = arith.constant 0 : i32
    %c0_i32_0 = arith.constant 0 : i32
    return %arg0, %c0_i32 : i32, i32
  }
}

module attributes {stable_mosaic.version = 11 : i64} {
  func.func @_scan_precomp_kernel(%arg0: i32, %arg1: i32, %arg2: memref<16x64xf32, #tpu.memory_space<vmem>>, %arg3: memref<64x128xf32, #tpu.memory_space<vmem>>, %arg4: memref<1x128xf32, #tpu.memory_space<vmem>>, %arg5: memref<16x128xf32, #tpu.memory_space<vmem>>, %arg6: memref<16x128xf32, #tpu.memory_space<vmem>>) attributes {dimension_semantics = [#tpu.dimension_semantics<parallel>, #tpu.dimension_semantics<arbitrary>], iteration_bounds = array<i64: 1, 1>, scalar_prefetch = 0 : i64, scratch_operands = 1 : i64, tpu.core_type = #tpu.core_type<tc>, window_params = [{transform_indices = @transform_0, window_bounds = array<i64: 16, 64>}, {transform_indices = @transform_1, window_bounds = array<i64: 64, 128>}, {pipeline_mode = #tpu.pipeline_mode<synchronous>, transform_indices = @transform_2, window_bounds = array<i64: 1, 128>}, {transform_indices = @transform_3, window_bounds = array<i64: 16, 128>}]} {
    %c0_i32 = arith.constant 0 : i32
    %0 = arith.cmpi eq, %arg1, %c0_i32 : i32
    %1 = arith.extui %0 : i1 to i32
    %c0_i32_0 = arith.constant 0 : i32
    %2 = arith.cmpi ne, %1, %c0_i32_0 : i32
    scf.if %2 {
      %cst_10 = arith.constant 0.000000e+00 : f32
      %12 = vector.broadcast %cst_10 : f32 to vector<16x128xf32>
      %c0_11 = arith.constant 0 : index
      %c0_12 = arith.constant 0 : index
      %13 = vector.load %arg6[%c0_11, %c0_12] : memref<16x128xf32, #tpu.memory_space<vmem>>, vector<16x128xf32>
      tpu.vector_store %arg6[%c0_11, %c0_12], %12 {strides = array<i32>} : memref<16x128xf32, #tpu.memory_space<vmem>>, vector<16x128xf32>,
    } else {
    }
    %c0 = arith.constant 0 : index
    %c0_1 = arith.constant 0 : index
    %3 = vector.load %arg2[%c0, %c0_1] : memref<16x64xf32, #tpu.memory_space<vmem>>, vector<16x64xf32>
    %c0_2 = arith.constant 0 : index
    %c0_3 = arith.constant 0 : index
    %4 = vector.load %arg3[%c0_2, %c0_3] : memref<64x128xf32, #tpu.memory_space<vmem>>, vector<64x128xf32>
    %c0_4 = arith.constant 0 : index
    %c0_5 = arith.constant 0 : index
    %5 = vector.load %arg6[%c0_4, %c0_5] : memref<16x128xf32, #tpu.memory_space<vmem>>, vector<16x128xf32>
    %cst = arith.constant dense<0.000000e+00> : vector<16x128xf32>
    %6 = tpu.matmul %3, %4, %cst {dimension_numbers = #tpu.dot_dimension_numbers<[1], [0], [0], [1], [0, 0, 1, 1], [], []>} : vector<16x64xf32>, vector<64x128xf32>, vector<16x128xf32> -> vector<16x128xf32>
    %7 = arith.addf %5, %6 : vector<16x128xf32>
    %c0_6 = arith.constant 0 : index
    %c0_7 = arith.constant 0 : index
    %8 = vector.load %arg6[%c0_6, %c0_7] : memref<16x128xf32, #tpu.memory_space<vmem>>, vector<16x128xf32>
    tpu.vector_store %arg6[%c0_6, %c0_7], %7 {strides = array<i32>} : memref<16x128xf32, #tpu.memory_space<vmem>>, vector<16x128xf32>,
    %c0_i32_8 = arith.constant 0 : i32
    %9 = arith.cmpi eq, %arg1, %c0_i32_8 : i32
    %10 = arith.extui %9 : i1 to i32
    %c0_i32_9 = arith.constant 0 : i32
    %11 = arith.cmpi ne, %10, %c0_i32_9 : i32
    scf.if %11 {
      %c0_10 = arith.constant 0 : index
      %c0_11 = arith.constant 0 : index
      %12 = vector.load %arg6[%c0_10, %c0_11] : memref<16x128xf32, #tpu.memory_space<vmem>>, vector<16x128xf32>
      %c0_12 = arith.constant 0 : index
      %c0_13 = arith.constant 0 : index
      %13 = vector.load %arg4[%c0_12, %c0_13] : memref<1x128xf32, #tpu.memory_space<vmem>>, vector<1x128xf32>
      %14 = vector.broadcast %13 : vector<1x128xf32> to vector<16x128xf32>
      %15 = arith.addf %12, %14 : vector<16x128xf32>
      %16 = arith.mulf %15, %15 : vector<16x128xf32>
      %cst_14 = arith.constant dense<0.000000e+00> : vector<16xf32>
      %17 = vector.multi_reduction <add>, %16, %cst_14 [1] : vector<16x128xf32> to vector<16xf32>
      %18 = vector.shape_cast %17 : vector<16xf32> to vector<16x1xf32>
      %19 = math.sqrt %18 : vector<16x1xf32>
      %cst_15 = arith.constant 9.99999993E-9 : f32
      %20 = vector.broadcast %cst_15 : f32 to vector<16x1xf32>
      %21 = arith.addf %19, %20 : vector<16x1xf32>
      %22 = vector.broadcast %21 : vector<16x1xf32> to vector<16x128xf32>
      %23 = arith.divf %15, %22 : vector<16x128xf32>
      %c0_16 = arith.constant 0 : index
      %c0_17 = arith.constant 0 : index
      %24 = vector.load %arg5[%c0_16, %c0_17] : memref<16x128xf32, #tpu.memory_space<vmem>>, vector<16x128xf32>
      tpu.vector_store %arg5[%c0_16, %c0_17], %23 {strides = array<i32>} : memref<16x128xf32, #tpu.memory_space<vmem>>, vector<16x128xf32>,
    } else {
    }
    return
  }
  func.func @transform_0(%arg0: i32, %arg1: i32) -> (i32, i32) {
    %c0_i32 = arith.constant 0 : i32
    return %arg0, %arg1 : i32, i32
  }
  func.func @transform_1(%arg0: i32, %arg1: i32) -> (i32, i32) {
    %c0_i32 = arith.constant 0 : i32
    %c0_i32_0 = arith.constant 0 : i32
    return %arg1, %c0_i32 : i32, i32
  }
  func.func @transform_2(%arg0: i32, %arg1: i32) -> (i32, i32) {
    %c0_i32 = arith.constant 0 : i32
    %c0_i32_0 = arith.constant 0 : i32
    %c0_i32_1 = arith.constant 0 : i32
    return %c0_i32, %c0_i32_0 : i32, i32
  }
  func.func @transform_3(%arg0: i32, %arg1: i32) -> (i32, i32) {
    %c0_i32 = arith.constant 0 : i32
    %c0_i32_0 = arith.constant 0 : i32
    return %arg0, %c0_i32 : i32, i32
  }
}

</mosaic_0001>

<llo_original>
// kernel: tpu_custom_call.1
$region0: #{tpu_custom_call.1}
  #allocation0 [shape = 'u32[]', space=smem, size = 0x4, offset = 0x4, fixed_abs, tag = 'smem constant byte address 0x4 - core index']
  #allocation1 [shape = 'u32[144,128]{1,0:T(1,128)}', space=vmem, size = 0x12000, scoped, tag = 'internal scratch']
  #allocation2 [shape = 'f32[16,128]{1,0:T(8,128)}', space=vmem, size = 0x2000, scoped, tag = 'scratch operand']
  %s0 = inlined_call_operand.hbm [shape: f32[16,64], index: 0, kind: input, shape index: {}]
  %s1 = inlined_call_operand.hbm [shape: f32[64,128], index: 1, kind: input, shape index: {}]
  %s2 = inlined_call_operand.vmem [shape: f32[1,128], index: 2, kind: input, shape index: {}]
  %s3 = inlined_call_operand.hbm [shape: f32[16,128], index: 3, kind: output, shape index: {}]
  %s4 = sld [smem:[#allocation0]]
  $region38: #{tpu_custom_call.1} parent=0
    _
  %s6 = ssub.s32 1, %s4
  %s7 = scalar_select 0, %s6, %s4
  $region1: #{tpu_custom_call.1} parent=0
    #allocation3 [shape = 'u8[8192]{0}', space=vmem, size = 0x2000, scoped, tag = 'input window, operand 0, single buffered']
    #allocation4 [shape = 's32[1]{0}', space=sflag, size = 0x4, scoped, tag = 'scoped memory for tpu_custom_call.1']
    #allocation5 [shape = 's32[1]{0}', space=sflag, size = 0x4, scoped, tag = 'scoped memory for tpu_custom_call.1']
    #allocation6 [shape = 'u8[32768]{0}', space=vmem, size = 0x8000, scoped, tag = 'input window, operand 1, single buffered']
    #allocation7 [shape = 's32[1]{0}', space=sflag, size = 0x4, scoped, tag = 'scoped memory for tpu_custom_call.1']
    #allocation8 [shape = 'u8[8192]{0}', space=vmem, size = 0x2000, scoped, tag = 'output window, operand 0, single buffered']
    %8 = vsyncpa [#allocation4], 0
    %9 = vsyncpa [#allocation7], 0
    %10 = vsyncpa [#allocation5], 0
    // Predicated region
    $region2: #{tpu_custom_call.1} parent=1 // pred_check
      _
    $region3: #{tpu_custom_call.1} parent=1 // pred_check_branch
      %12 = sbr.rel (0) target = $region5
    $region4: #{tpu_custom_call.1} parent=1 // pred_region
      %s14 = ssub.s32 256, 256
      %15 = vsyncadd [#allocation4], %s14
      %s16 = sshll.u32 [#allocation3], 4
      %s17 = int_to_ptr.vmem [resolvable:$true] %s16
      %22 = dma.hbm_to_vmem [thread:$0]  %s0, 256, %s17, [#allocation4], 128, 128, 8
    $region5: #{tpu_custom_call.1} parent=1 // pred_fallthru
      _
    // Predicated region
    $region6: #{tpu_custom_call.1} parent=1 // pred_check
      _
    $region7: #{tpu_custom_call.1} parent=1 // pred_check_branch
      %24 = sbr.rel (0) target = $region9
    $region8: #{tpu_custom_call.1} parent=1 // pred_region
      %s26 = ssub.s32 1024, 1024
      %27 = vsyncadd [#allocation7], %s26
      %s28 = sshll.u32 [#allocation6], 4
      %s29 = int_to_ptr.vmem [resolvable:$true] %s28
      %34 = dma.hbm_to_vmem [thread:$0]  %s1, 1024, %s29, [#allocation7], 128, 128, 8
    $region9: #{tpu_custom_call.1} parent=1 // pred_fallthru
      _
    // Predicated region
    $region10: #{tpu_custom_call.1} parent=1 // pred_check
      _
    $region11: #{tpu_custom_call.1} parent=1 // pred_check_branch
      %36 = sbr.rel (0) target = $region13
    $region12: #{tpu_custom_call.1} parent=1 // pred_region
      _
    $region13: #{tpu_custom_call.1} parent=1 // pred_fallthru
      _
    // Predicated region
    $region14: #{tpu_custom_call.1} parent=1 // pred_check
      _
    $region15: #{tpu_custom_call.1} parent=1 // pred_check_branch
      %38 = sbr.rel (0) target = $region17
    $region16: #{tpu_custom_call.1} parent=1 // pred_region
      %39 = dma.done [#allocation4], 256
    $region17: #{tpu_custom_call.1} parent=1 // pred_fallthru
      _
    // Predicated region
    $region18: #{tpu_custom_call.1} parent=1 // pred_check
      _
    $region19: #{tpu_custom_call.1} parent=1 // pred_check_branch
      %41 = sbr.rel (0) target = $region21
    $region20: #{tpu_custom_call.1} parent=1 // pred_region
      %42 = dma.done [#allocation7], 1024
    $region21: #{tpu_custom_call.1} parent=1 // pred_fallthru
      _
    %p43 = scmp.eq.s32.totalorder 0, 0
    // Predicated region
    $region22: #{tpu_custom_call.1} parent=1 // pred_check
      %p44 = pneg %p43
    $region23: #{tpu_custom_call.1} parent=1 // pred_check_branch
      %46 = sbr.rel (%p44) target = $region25
    $region24: #{tpu_custom_call.1} parent=1 // pred_region
      %47 = vst [vmem:[#allocation2] sm:$0xff] 0.0
      %48 = vst [vmem:[#allocation2 + $0x8] sm:$0xff] 0.0
    $region25: #{tpu_custom_call.1} parent=1 // pred_fallthru
      _
    %v49 = vld [vmem:[#allocation3] sm:$0xff]
    %v50 = vld [vmem:[#allocation3 + $0x8] sm:$0xff]
    %v51 = vld [vmem:[#allocation6] sm:$0xff]
    %v52 = vld [vmem:[#allocation6 + $0x8] sm:$0xff]
    %v53 = vld [vmem:[#allocation6 + $0x10] sm:$0xff]
    %v54 = vld [vmem:[#allocation6 + $0x18] sm:$0xff]
    %v55 = vld [vmem:[#allocation6 + $0x20] sm:$0xff]
    %v56 = vld [vmem:[#allocation6 + $0x28] sm:$0xff]
    %v57 = vld [vmem:[#allocation6 + $0x30] sm:$0xff]
    %v58 = vld [vmem:[#allocation6 + $0x38] sm:$0xff]
    %v59 = vld [vmem:[#allocation2] sm:$0xff]
    %v60 = vld [vmem:[#allocation2 + $0x8] sm:$0xff]
    %vm61 = vcmask 523264
    %v63 = vsel %vm61, %v49, 0
    %v66 = vsel %vm61, %v50, 0
    %68 = vmatprep.subr.mxu0 0.0
    %69 = vmatpush1.msra.mxu0 %v51
    %70 = vmatprep.subr.mxu0 0.0
    %71 = vmatpush1.msra.mxu0 %v52
    %72 = vmatprep.subr.mxu0 0.0
    %73 = vmatpush1.msra.mxu0 %v53
    %74 = vmatprep.subr.mxu0 0.0
    %75 = vmatpush1.msra.mxu0 %v54
    %76 = vmatprep.subr.mxu0 0.0
    %77 = vmatpush1.msra.mxu0 %v55
    %78 = vmatprep.subr.mxu0 0.0
    %79 = vmatpush1.msra.mxu0 %v56
    %80 = vmatprep.subr.mxu0 0.0
    %81 = vmatpush1.msra.mxu0 %v57
    %82 = vmatprep.subr.mxu0 0.0
    %83 = vmatpush1.msra.mxu0 %v58
    %84 = vmatprep.subr.mxu0 0.0
    %85 = vmatpush1.msra.mxu0 0.0
    %86 = vmatprep.subr.mxu0 0.0
    %87 = vmatpush1.msra.mxu0 0.0
    %88 = vmatprep.subr.mxu0 0.0
    %89 = vmatpush1.msra.mxu0 0.0
    %90 = vmatprep.subr.mxu0 0.0
    %91 = vmatpush1.msra.mxu0 0.0
    %92 = vmatprep.subr.mxu0 0.0
    %93 = vmatpush1.msra.mxu0 0.0
    %94 = vmatprep.subr.mxu0 0.0
    %95 = vmatpush1.msra.mxu0 0.0
    %96 = vmatprep.subr.mxu0 0.0
    %97 = vmatpush1.msra.mxu0 0.0
    %98 = vmatprep.subr.mxu0 0.0
    %99 = vmatpush1.msra.mxu0 0.0
    %100 = vmatprep.subr.mxu0 0.0
    %101 = vmatpush1.msra.mxu0 0.0
    %102 = vmatprep.subr.mxu0 0.0
    %103 = vmatpush1.msra.mxu0 0.0
    %104 = vmatprep.subr.mxu0 0.0
    %105 = vmatpush1.msra.mxu0 0.0
    %106 = vmatprep.subr.mxu0 0.0
    %107 = vmatpush1.msra.mxu0 0.0
    %108 = vmatprep.subr.mxu0 0.0
    %109 = vmatpush1.msra.mxu0 0.0
    %110 = vmatprep.subr.mxu0 0.0
    %111 = vmatpush1.msra.mxu0 0.0
    %112 = vmatprep.subr.mxu0 0.0
    %113 = vmatpush1.msra.mxu0 0.0
    %114 = vmatprep.subr.mxu0 0.0
    %115 = vmatpush1.msra.mxu0 0.0
    %116 = vmatprep.subr.mxu0 0.0
    %117 = vmatpush1.msra.mxu0 0.0
    %118 = vmatprep.subr.mxu0 0.0
    %119 = vmatpush1.msra.mxu0 0.0
    %120 = vmatprep.subr.mxu0 0.0
    %121 = vmatpush1.msra.mxu0 0.0
    %122 = vmatprep.subr.mxu0 0.0
    %123 = vmatpush1.msra.mxu0 0.0
    %124 = vmatprep.subr.mxu0 0.0
    %125 = vmatpush1.msra.mxu0 0.0
    %126 = vmatprep.subr.mxu0 0.0
    %127 = vmatpush1.msra.mxu0 0.0
    %128 = vmatprep.subr.mxu0 0.0
    %129 = vmatpush1.msra.mxu0 0.0
    %130 = vmatprep.subr.mxu0 0.0
    %131 = vmatpush1.msra.mxu0 0.0
    %132 = vmatprep.mubr.f32.mxu0 0.0
    %133 = vmatmul.mubr.f32.gmra.mrb[0].mxu0 %v63
    %v134 = vpop.f32.mrb[0].mxu0
    %v135 = vadd.f32 0.0, %v134
    %v136 = vpop.f32.mrb[0].mxu0
    %137 = vmatprep.mubr.f32.mxu0 0.0
    %138 = vmatmul.mubr.f32.gmra.mrb[0].mxu0 %v66
    %v139 = vpop.f32.mrb[0].mxu0
    %v140 = vadd.f32 0.0, %v139
    %v141 = vpop.f32.mrb[0].mxu0
    %142 = vdwg.mxu0
    %v143 = vadd.f32 %v59, %v135
    %v144 = vadd.f32 %v60, %v140
    %145 = vst [vmem:[#allocation2] sm:$0xff] %v143
    %146 = vst [vmem:[#allocation2 + $0x8] sm:$0xff] %v144
    // Predicated region
    $region26: #{tpu_custom_call.1} parent=1 // pred_check
      %p147 = pneg %p43
    $region27: #{tpu_custom_call.1} parent=1 // pred_check_branch
      %149 = sbr.rel (%p147) target = $region29
    $region28: #{tpu_custom_call.1} parent=1 // pred_region
      %v150 = vld [vmem:[#allocation2] sm:$0xff]
      %v151 = vld [vmem:[#allocation2 + $0x8] sm:$0xff]
      %v152 = vld [vmem:[%s2] sm:$0x1]
      %v154 = vlaneseq
      %v155 = vshrl.u32 %v154, 7
      %v156 = vsub.s32 0, %v155
      %v157 = vrot.slane %v152, %v156
      %v159 = vadd.f32 %v150, %v157
      %v160 = vadd.f32 %v151, %v157
      %v161 = vmul.f32 %v159, %v159
      %v162 = vmul.f32 %v160, %v160
      %163 = vadd.xlane.f32.xlu0 %v161
      %v164 = vpop.xlane.xlu0 %163
      %165 = vadd.xlane.f32.xlu0 %v162
      %v166 = vpop.xlane.xlu0 %165
      %v167 = vrsqrt.pop %v164
      %v168 = vmul.f32 %v164, %v167
      %vm169 = vcmp.eq.f32.partialorder %v164, inf
      %v170 = vsel %vm169, %v164, %v168
      %vm171 = vcmp.eq.f32.partialorder %v164, 0.0
      %v172 = vand.u32 %v164, 2147483648
      %v173 = vsel %vm171, %v172, %v170
      %v174 = vrsqrt.pop %v166
      %v175 = vmul.f32 %v166, %v174
      %vm176 = vcmp.eq.f32.partialorder %v166, inf
      %v177 = vsel %vm176, %v166, %v175
      %vm178 = vcmp.eq.f32.partialorder %v166, 0.0
      %v179 = vand.u32 %v166, 2147483648
      %v180 = vsel %vm178, %v179, %v177
      %v181 = vadd.f32 %v173, 1e-08
      %v182 = vadd.f32 %v180, 1e-08
      %v183 = vrcp.pop %v181
      %v184 = vmul.f32 %v159, %v183
      %v185 = vrcp.pop %v182
      %v186 = vmul.f32 %v160, %v185
      %187 = vst [vmem:[#allocation8] sm:$0xff] %v184
      %188 = vst [vmem:[#allocation8 + $0x8] sm:$0xff] %v186
    $region29: #{tpu_custom_call.1} parent=1 // pred_fallthru
      _
    // Predicated region
    $region30: #{tpu_custom_call.1} parent=1 // pred_check
      _
    $region31: #{tpu_custom_call.1} parent=1 // pred_check_branch
      %190 = sbr.rel (0) target = $region33
    $region32: #{tpu_custom_call.1} parent=1 // pred_region
      %s192 = ssub.s32 256, 256
      %193 = vsyncadd [#allocation5], %s192
      %s194 = sshll.u32 [#allocation8], 4
      %s195 = int_to_ptr.vmem [resolvable:$true] %s194
      %200 = dma.vmem_to_hbm [thread:$0]  %s195, 256, %s3, [#allocation5], 128, 128, 8
    $region33: #{tpu_custom_call.1} parent=1 // pred_fallthru
      _
    // Predicated region
    $region34: #{tpu_custom_call.1} parent=1 // pred_check
      _
    $region35: #{tpu_custom_call.1} parent=1 // pred_check_branch
      %202 = sbr.rel (0) target = $region37
    $region36: #{tpu_custom_call.1} parent=1 // pred_region
      %203 = dma.done [#allocation5], 256
    $region37: #{tpu_custom_call.1} parent=1 // pred_fallthru
      _
    %204 = vsyncpa [#allocation4], 1
    %205 = vsyncpa [#allocation7], 1
    %206 = vsyncpa [#allocation5], 1

// kernel: tpu_custom_call.1
$region0: #{tpu_custom_call.1}
  #allocation0 [shape = 'u32[]', space=smem, size = 0x4, offset = 0x4, fixed_abs, tag = 'smem constant byte address 0x4 - core index']
  #allocation1 [shape = 'u32[144,128]{1,0:T(1,128)}', space=vmem, size = 0x12000, scoped, tag = 'internal scratch']
  #allocation2 [shape = 'f32[16,128]{1,0:T(8,128)}', space=vmem, size = 0x2000, scoped, tag = 'scratch operand']
  %s0 = inlined_call_operand.hbm [shape: f32[16,64], index: 0, kind: input, shape index: {}]
  %s1 = inlined_call_operand.hbm [shape: f32[64,128], index: 1, kind: input, shape index: {}]
  %s2 = inlined_call_operand.vmem [shape: f32[1,128], index: 2, kind: input, shape index: {}]
  %s3 = inlined_call_operand.hbm [shape: f32[16,128], index: 3, kind: output, shape index: {}]
  %s4 = sld [smem:[#allocation0]]
  $region38: #{tpu_custom_call.1} parent=0
    _
  %s6 = ssub.s32 1, %s4
  %s7 = scalar_select 0, %s6, %s4
  $region1: #{tpu_custom_call.1} parent=0
    #allocation3 [shape = 'u8[8192]{0}', space=vmem, size = 0x2000, scoped, tag = 'input window, operand 0, single buffered']
    #allocation4 [shape = 's32[1]{0}', space=sflag, size = 0x4, scoped, tag = 'scoped memory for tpu_custom_call.1']
    #allocation5 [shape = 's32[1]{0}', space=sflag, size = 0x4, scoped, tag = 'scoped memory for tpu_custom_call.1']
    #allocation6 [shape = 'u8[32768]{0}', space=vmem, size = 0x8000, scoped, tag = 'input window, operand 1, single buffered']
    #allocation7 [shape = 's32[1]{0}', space=sflag, size = 0x4, scoped, tag = 'scoped memory for tpu_custom_call.1']
    #allocation8 [shape = 'u8[8192]{0}', space=vmem, size = 0x2000, scoped, tag = 'output window, operand 0, single buffered']
    %8 = vsyncpa [#allocation4], 0
    %9 = vsyncpa [#allocation7], 0
    %10 = vsyncpa [#allocation5], 0
    // Predicated region
    $region2: #{tpu_custom_call.1} parent=1 // pred_check
      _
    $region3: #{tpu_custom_call.1} parent=1 // pred_check_branch
      %12 = sbr.rel (0) target = $region5
    $region4: #{tpu_custom_call.1} parent=1 // pred_region
      %s14 = ssub.s32 256, 256
      %15 = vsyncadd [#allocation4], %s14
      %s16 = sshll.u32 [#allocation3], 4
      %s17 = int_to_ptr.vmem [resolvable:$true] %s16
      %22 = dma.hbm_to_vmem [thread:$0]  %s0, 256, %s17, [#allocation4], 128, 128, 8
    $region5: #{tpu_custom_call.1} parent=1 // pred_fallthru
      _
    // Predicated region
    $region6: #{tpu_custom_call.1} parent=1 // pred_check
      _
    $region7: #{tpu_custom_call.1} parent=1 // pred_check_branch
      %24 = sbr.rel (0) target = $region9
    $region8: #{tpu_custom_call.1} parent=1 // pred_region
      %s26 = ssub.s32 1024, 1024
      %27 = vsyncadd [#allocation7], %s26
      %s28 = sshll.u32 [#allocation6], 4
      %s29 = int_to_ptr.vmem [resolvable:$true] %s28
      %34 = dma.hbm_to_vmem [thread:$0]  %s1, 1024, %s29, [#allocation7], 128, 128, 8
    $region9: #{tpu_custom_call.1} parent=1 // pred_fallthru
      _
    // Predicated region
    $region10: #{tpu_custom_call.1} parent=1 // pred_check
      _
    $region11: #{tpu_custom_call.1} parent=1 // pred_check_branch
      %36 = sbr.rel (0) target = $region13
    $region12: #{tpu_custom_call.1} parent=1 // pred_region
      _
    $region13: #{tpu_custom_call.1} parent=1 // pred_fallthru
      _
    // Predicated region
    $region14: #{tpu_custom_call.1} parent=1 // pred_check
      _
    $region15: #{tpu_custom_call.1} parent=1 // pred_check_branch
      %38 = sbr.rel (0) target = $region17
    $region16: #{tpu_custom_call.1} parent=1 // pred_region
      %39 = dma.done [#allocation4], 256
    $region17: #{tpu_custom_call.1} parent=1 // pred_fallthru
      _
    // Predicated region
    $region18: #{tpu_custom_call.1} parent=1 // pred_check
      _
    $region19: #{tpu_custom_call.1} parent=1 // pred_check_branch
      %41 = sbr.rel (0) target = $region21
    $region20: #{tpu_custom_call.1} parent=1 // pred_region
      %42 = dma.done [#allocation7], 1024
    $region21: #{tpu_custom_call.1} parent=1 // pred_fallthru
      _
    %p43 = scmp.eq.s32.totalorder 0, 0
    // Predicated region
    $region22: #{tpu_custom_call.1} parent=1 // pred_check
      %p44 = pneg %p43
    $region23: #{tpu_custom_call.1} parent=1 // pred_check_branch
      %46 = sbr.rel (%p44) target = $region25
    $region24: #{tpu_custom_call.1} parent=1 // pred_region
      %47 = vst [vmem:[#allocation2] sm:$0xff] 0.0
      %48 = vst [vmem:[#allocation2 + $0x8] sm:$0xff] 0.0
    $region25: #{tpu_custom_call.1} parent=1 // pred_fallthru
      _
    %v49 = vld [vmem:[#allocation3] sm:$0xff]
    %v50 = vld [vmem:[#allocation3 + $0x8] sm:$0xff]
    %v51 = vld [vmem:[#allocation6] sm:$0xff]
    %v52 = vld [vmem:[#allocation6 + $0x8] sm:$0xff]
    %v53 = vld [vmem:[#allocation6 + $0x10] sm:$0xff]
    %v54 = vld [vmem:[#allocation6 + $0x18] sm:$0xff]
    %v55 = vld [vmem:[#allocation6 + $0x20] sm:$0xff]
    %v56 = vld [vmem:[#allocation6 + $0x28] sm:$0xff]
    %v57 = vld [vmem:[#allocation6 + $0x30] sm:$0xff]
    %v58 = vld [vmem:[#allocation6 + $0x38] sm:$0xff]
    %v59 = vld [vmem:[#allocation2] sm:$0xff]
    %v60 = vld [vmem:[#allocation2 + $0x8] sm:$0xff]
    %vm61 = vcmask 523264
    %v63 = vsel %vm61, %v49, 0
    %v66 = vsel %vm61, %v50, 0
    %68 = vmatprep.subr.mxu0 0.0
    %69 = vmatpush1.msra.mxu0 %v51
    %70 = vmatprep.subr.mxu0 0.0
    %71 = vmatpush1.msra.mxu0 %v52
    %72 = vmatprep.subr.mxu0 0.0
    %73 = vmatpush1.msra.mxu0 %v53
    %74 = vmatprep.subr.mxu0 0.0
    %75 = vmatpush1.msra.mxu0 %v54
    %76 = vmatprep.subr.mxu0 0.0
    %77 = vmatpush1.msra.mxu0 %v55
    %78 = vmatprep.subr.mxu0 0.0
    %79 = vmatpush1.msra.mxu0 %v56
    %80 = vmatprep.subr.mxu0 0.0
    %81 = vmatpush1.msra.mxu0 %v57
    %82 = vmatprep.subr.mxu0 0.0
    %83 = vmatpush1.msra.mxu0 %v58
    %84 = vmatprep.subr.mxu0 0.0
    %85 = vmatpush1.msra.mxu0 0.0
    %86 = vmatprep.subr.mxu0 0.0
    %87 = vmatpush1.msra.mxu0 0.0
    %88 = vmatprep.subr.mxu0 0.0
    %89 = vmatpush1.msra.mxu0 0.0
    %90 = vmatprep.subr.mxu0 0.0
    %91 = vmatpush1.msra.mxu0 0.0
    %92 = vmatprep.subr.mxu0 0.0
    %93 = vmatpush1.msra.mxu0 0.0
    %94 = vmatprep.subr.mxu0 0.0
    %95 = vmatpush1.msra.mxu0 0.0
    %96 = vmatprep.subr.mxu0 0.0
    %97 = vmatpush1.msra.mxu0 0.0
    %98 = vmatprep.subr.mxu0 0.0
    %99 = vmatpush1.msra.mxu0 0.0
    %100 = vmatprep.subr.mxu0 0.0
    %101 = vmatpush1.msra.mxu0 0.0
    %102 = vmatprep.subr.mxu0 0.0
    %103 = vmatpush1.msra.mxu0 0.0
    %104 = vmatprep.subr.mxu0 0.0
    %105 = vmatpush1.msra.mxu0 0.0
    %106 = vmatprep.subr.mxu0 0.0
    %107 = vmatpush1.msra.mxu0 0.0
    %108 = vmatprep.subr.mxu0 0.0
    %109 = vmatpush1.msra.mxu0 0.0
    %110 = vmatprep.subr.mxu0 0.0
    %111 = vmatpush1.msra.mxu0 0.0
    %112 = vmatprep.subr.mxu0 0.0
    %113 = vmatpush1.msra.mxu0 0.0
    %114 = vmatprep.subr.mxu0 0.0
    %115 = vmatpush1.msra.mxu0 0.0
    %116 = vmatprep.subr.mxu0 0.0
    %117 = vmatpush1.msra.mxu0 0.0
    %118 = vmatprep.subr.mxu0 0.0
    %119 = vmatpush1.msra.mxu0 0.0
    %120 = vmatprep.subr.mxu0 0.0
    %121 = vmatpush1.msra.mxu0 0.0
    %122 = vmatprep.subr.mxu0 0.0
    %123 = vmatpush1.msra.mxu0 0.0
    %124 = vmatprep.subr.mxu0 0.0
    %125 = vmatpush1.msra.mxu0 0.0
    %126 = vmatprep.subr.mxu0 0.0
    %127 = vmatpush1.msra.mxu0 0.0
    %128 = vmatprep.subr.mxu0 0.0
    %129 = vmatpush1.msra.mxu0 0.0
    %130 = vmatprep.subr.mxu0 0.0
    %131 = vmatpush1.msra.mxu0 0.0
    %132 = vmatprep.mubr.f32.mxu0 0.0
    %133 = vmatmul.mubr.f32.gmra.mrb[0].mxu0 %v63
    %v134 = vpop.f32.mrb[0].mxu0
    %v135 = vadd.f32 0.0, %v134
    %v136 = vpop.f32.mrb[0].mxu0
    %137 = vmatprep.mubr.f32.mxu0 0.0
    %138 = vmatmul.mubr.f32.gmra.mrb[0].mxu0 %v66
    %v139 = vpop.f32.mrb[0].mxu0
    %v140 = vadd.f32 0.0, %v139
    %v141 = vpop.f32.mrb[0].mxu0
    %142 = vdwg.mxu0
    %v143 = vadd.f32 %v59, %v135
    %v144 = vadd.f32 %v60, %v140
    %145 = vst [vmem:[#allocation2] sm:$0xff] %v143
    %146 = vst [vmem:[#allocation2 + $0x8] sm:$0xff] %v144
    // Predicated region
    $region26: #{tpu_custom_call.1} parent=1 // pred_check
      %p147 = pneg %p43
    $region27: #{tpu_custom_call.1} parent=1 // pred_check_branch
      %149 = sbr.rel (%p147) target = $region29
    $region28: #{tpu_custom_call.1} parent=1 // pred_region
      %v150 = vld [vmem:[#allocation2] sm:$0xff]
      %v151 = vld [vmem:[#allocation2 + $0x8] sm:$0xff]
      %v152 = vld [vmem:[%s2] sm:$0x1]
      %v154 = vlaneseq
      %v155 = vshrl.u32 %v154, 7
      %v156 = vsub.s32 0, %v155
      %v157 = vrot.slane %v152, %v156
      %v159 = vadd.f32 %v150, %v157
      %v160 = vadd.f32 %v151, %v157
      %v161 = vmul.f32 %v159, %v159
      %v162 = vmul.f32 %v160, %v160
      %163 = vadd.xlane.f32.xlu0 %v161
      %v164 = vpop.xlane.xlu0 %163
      %165 = vadd.xlane.f32.xlu0 %v162
      %v166 = vpop.xlane.xlu0 %165
      %v167 = vrsqrt.pop %v164
      %v168 = vmul.f32 %v164, %v167
      %vm169 = vcmp.eq.f32.partialorder %v164, inf
      %v170 = vsel %vm169, %v164, %v168
      %vm171 = vcmp.eq.f32.partialorder %v164, 0.0
      %v172 = vand.u32 %v164, 2147483648
      %v173 = vsel %vm171, %v172, %v170
      %v174 = vrsqrt.pop %v166
      %v175 = vmul.f32 %v166, %v174
      %vm176 = vcmp.eq.f32.partialorder %v166, inf
      %v177 = vsel %vm176, %v166, %v175
      %vm178 = vcmp.eq.f32.partialorder %v166, 0.0
      %v179 = vand.u32 %v166, 2147483648
      %v180 = vsel %vm178, %v179, %v177
      %v181 = vadd.f32 %v173, 1e-08
      %v182 = vadd.f32 %v180, 1e-08
      %v183 = vrcp.pop %v181
      %v184 = vmul.f32 %v159, %v183
      %v185 = vrcp.pop %v182
      %v186 = vmul.f32 %v160, %v185
      %187 = vst [vmem:[#allocation8] sm:$0xff] %v184
      %188 = vst [vmem:[#allocation8 + $0x8] sm:$0xff] %v186
    $region29: #{tpu_custom_call.1} parent=1 // pred_fallthru
      _
    // Predicated region
    $region30: #{tpu_custom_call.1} parent=1 // pred_check
      _
    $region31: #{tpu_custom_call.1} parent=1 // pred_check_branch
      %190 = sbr.rel (0) target = $region33
    $region32: #{tpu_custom_call.1} parent=1 // pred_region
      %s192 = ssub.s32 256, 256
      %193 = vsyncadd [#allocation5], %s192
      %s194 = sshll.u32 [#allocation8], 4
      %s195 = int_to_ptr.vmem [resolvable:$true] %s194
      %200 = dma.vmem_to_hbm [thread:$0]  %s195, 256, %s3, [#allocation5], 128, 128, 8
    $region33: #{tpu_custom_call.1} parent=1 // pred_fallthru
      _
    // Predicated region
    $region34: #{tpu_custom_call.1} parent=1 // pred_check
      _
    $region35: #{tpu_custom_call.1} parent=1 // pred_check_branch
      %202 = sbr.rel (0) target = $region37
    $region36: #{tpu_custom_call.1} parent=1 // pred_region
      %203 = dma.done [#allocation5], 256
    $region37: #{tpu_custom_call.1} parent=1 // pred_fallthru
      _
    %204 = vsyncpa [#allocation4], 1
    %205 = vsyncpa [#allocation7], 1
    %206 = vsyncpa [#allocation5], 1

</llo_original>
